<compile_context>
chip_gen: v6e
topology: v6e:2x2x1
jax: 0.10.0
libtpu: 0.0.40
codegen_flags: <defaults>
</compile_context>

<pallas_src>
import functools

import jax
import jax.numpy as jnp
from jax.experimental import pallas as pl
from jax.experimental.pallas import tpu as pltpu

# ---- Module constants (from the PyTorch script) -----------------------------
BATCH_SIZE = 1
INPUT_SIZE = 5
NUM_CLASSES = 5
NUM_LAYER = 1
OUTPUT_SIZE = 5   # hidden size
SEQ_LEN = 1

# ---- TPU layout constants ----------------------------------------------------
LANE = 128
SUBLANE = 8
I_PAD = LANE      # input features padded to one lane width
H_PAD = LANE      # hidden padded to one lane width
C_PAD = LANE      # classes padded to one lane width

# Row offsets of the transposed weight blocks inside the packed weight slab.
W_IH_OFF = 0
W_HH_OFF = I_PAD
W_FC_OFF = I_PAD + H_PAD
W_ROWS = I_PAD + 2 * H_PAD


def _round_up(x, m):
    return ((x + m - 1) // m) * m


def rnn_fc_kernel(x_ref, h0_ref, w_ref, b_ref, h_out_ref, y_ref,
                  xw_ref, hbuf_ref, *, seq_len, ts):
    """One sequence chunk: hoisted input projection, serial tanh recurrence, FC head.

    Block shapes (all padded, f32):
      x:(ts,I_PAD)  h0:(SUBLANE,H_PAD)  w:(W_ROWS,LANE)  b:(SUBLANE,LANE)
      h_out:(SUBLANE,H_PAD)  y:(ts,C_PAD)
      scratch: xw:(ts,H_PAD)  hbuf:(ts,H_PAD)

    The hidden state is carried across chunks in the resident h_out block
    (constant output index map); row 0 is the live hidden state.
    """
    chunk = pl.program_id(0)

    # First chunk: seed the carried hidden state from h0 (aliased with h_out in HBM).
    @pl.when(chunk == 0)
    def _():
        h_out_ref[...] = h0_ref[...]

    # 1) Hoisted input projection for the whole chunk: one (ts,I)@(I,H) MXU pass.
    xw_ref[...] = (
        jnp.dot(x_ref[...], w_ref[W_IH_OFF:W_IH_OFF + I_PAD, :],
                preferred_element_type=jnp.float32)
        + b_ref[0:1, :])

    # Hoist the recurrent weight load out of the step loop (held in vregs).
    w_hh = w_ref[W_HH_OFF:W_HH_OFF + H_PAD, :]
    base = chunk * ts

    # 2) Serial recurrence: only a (1,H)@(H,H) dot + tanh on the critical path.
    #    Steps past seq_len (sequence padding) leave h unchanged (keep is 0/1, exact).
    def step(t, h):
        pre = xw_ref[pl.ds(t, 1), :] + jnp.dot(
            h, w_hh, preferred_element_type=jnp.float32)
        keep = (base + t < seq_len).astype(jnp.float32)
        h_new = keep * jnp.tanh(pre) + (1.0 - keep) * h
        hbuf_ref[pl.ds(t, 1), :] = h_new
        return h_new

    h_final = jax.lax.fori_loop(0, ts, step, h_out_ref[0:1, :],
                                unroll=min(ts, 8))

    # Carry / emit the hidden state with a dense (8,128) slab store (row 0 is live).
    h_out_ref[...] = jnp.broadcast_to(h_final, h_out_ref.shape)

    # 3) FC head over the whole chunk at once; single lane-dense slab store.
    y_ref[...] = (
        jnp.dot(hbuf_ref[...], w_ref[W_FC_OFF:W_FC_OFF + H_PAD, :],
                preferred_element_type=jnp.float32)
        + b_ref[1:2, :])


def pack_params(params):
    """One-time packing: transpose, zero-pad to lane-dense shapes, fuse b_ih+b_hh,
    and stack everything into one weight slab + one bias slab (2 operands, not 5)."""
    w_ih, w_hh, b_ih, b_hh, w_fc, b_fc = params
    w_slab = jnp.zeros((W_ROWS, LANE), jnp.float32)
    w_slab = w_slab.at[W_IH_OFF:W_IH_OFF + INPUT_SIZE,
                       :OUTPUT_SIZE].set(jnp.transpose(w_ih))
    w_slab = w_slab.at[W_HH_OFF:W_HH_OFF + OUTPUT_SIZE,
                       :OUTPUT_SIZE].set(jnp.transpose(w_hh))
    w_slab = w_slab.at[W_FC_OFF:W_FC_OFF + OUTPUT_SIZE,
                       :NUM_CLASSES].set(jnp.transpose(w_fc))
    b_slab = jnp.zeros((SUBLANE, LANE), jnp.float32)
    b_slab = b_slab.at[0, :OUTPUT_SIZE].set(b_ih + b_hh)
    b_slab = b_slab.at[1, :NUM_CLASSES].set(b_fc)
    return w_slab, b_slab


def make_rnn_forward(seq_len, ts=None):
    """Build a jitted forward(hidden, x, packed) for a given sequence length.

    ts = sequence-chunk (grid tile) size in rows.  The default keeps chunks
    <= 256 rows so double-buffered x/y blocks + xw/hbuf scratch stay far below
    the 16/32/32 MiB scoped-VMEM defaults of v5e/v6e/v7x (and v7x's 64 MiB
    physical VMEM) even if seq_len is scaled up.
    """
    assert BATCH_SIZE == 1, "module fixes batch_size=1; generalize before scaling"
    if ts is None:
        ts = min(256, _round_up(seq_len, SUBLANE))
    ts = _round_up(ts, SUBLANE)
    s_pad = _round_up(seq_len, ts)
    n_chunks = s_pad // ts

    kernel = functools.partial(rnn_fc_kernel, seq_len=seq_len, ts=ts)

    grid_spec = pltpu.PrefetchScalarGridSpec(
        num_scalar_prefetch=0,
        grid=(n_chunks,),
        in_specs=[
            pl.BlockSpec((ts, I_PAD), lambda i: (i, 0)),       # x: streamed per chunk
            pl.BlockSpec((SUBLANE, H_PAD), lambda i: (0, 0)),  # h0: fetched once
            pl.BlockSpec((W_ROWS, LANE), lambda i: (0, 0)),    # packed weights
            pl.BlockSpec((SUBLANE, LANE), lambda i: (0, 0)),   # packed biases
        ],
        out_specs=(
            pl.BlockSpec((SUBLANE, H_PAD), lambda i: (0, 0)),  # h carry / h_out (resident)
            pl.BlockSpec((ts, C_PAD), lambda i: (i, 0)),       # y: streamed per chunk
        ),
        scratch_shapes=[
            pltpu.VMEM((ts, H_PAD), jnp.float32),   # hoisted x @ W_ih + b (per chunk)
            pltpu.VMEM((ts, H_PAD), jnp.float32),   # per-step hidden states (per chunk)
        ],
    )

    pallas_fn = pl.pallas_call(
        kernel,
        out_shape=(
            jax.ShapeDtypeStruct((SUBLANE, H_PAD), jnp.float32),
            jax.ShapeDtypeStruct((s_pad, C_PAD), jnp.float32),
        ),
        grid_spec=grid_spec,
        input_output_aliases={1: 0},   # reuse the h0 HBM buffer for h_out
        compiler_params=pltpu.CompilerParams(
            dimension_semantics=("arbitrary",),   # serial recurrence over chunks
            vmem_limit_bytes=16 * 1024 * 1024,    # explicit, safe on v5e/v6e/v7x
        ),
    )

    @jax.jit
    def forward(hidden, x, packed):
        """Mirrors RNN.forward(hidden, x): returns (hidden_out, out)."""
        w_slab, b_slab = packed
        # x.view(batch, seq, input); batch == 1 so drop it, then one pad op each.
        x2d = x.reshape(BATCH_SIZE, seq_len, INPUT_SIZE)[0].astype(jnp.float32)
        x_pad = jnp.pad(x2d, ((0, s_pad - seq_len), (0, I_PAD - INPUT_SIZE)))
        h0 = hidden.reshape(BATCH_SIZE, OUTPUT_SIZE).astype(jnp.float32)
        h0_pad = jnp.pad(h0, ((0, SUBLANE - BATCH_SIZE), (0, H_PAD - OUTPUT_SIZE)))

        h_out, y_out = pallas_fn(x_pad, h0_pad, w_slab, b_slab)

        hidden_out = h_out[:BATCH_SIZE, :OUTPUT_SIZE].reshape(
            NUM_LAYER, BATCH_SIZE, OUTPUT_SIZE)
        out = y_out[:seq_len, :NUM_CLASSES]   # (batch*seq, num_classes); batch == 1
        return hidden_out, out

    return forward


def init_params(key):
    """Deterministic parameter init, same shapes as nn.RNN / nn.Linear."""
    k = 1.0 / jnp.sqrt(jnp.float32(OUTPUT_SIZE))
    keys = jax.random.split(key, 6)
    w_ih = jax.random.uniform(keys[0], (OUTPUT_SIZE, INPUT_SIZE), jnp.float32, -k, k)
    w_hh = jax.random.uniform(keys[1], (OUTPUT_SIZE, OUTPUT_SIZE), jnp.float32, -k, k)
    b_ih = jax.random.uniform(keys[2], (OUTPUT_SIZE,), jnp.float32, -k, k)
    b_hh = jax.random.uniform(keys[3], (OUTPUT_SIZE,), jnp.float32, -k, k)
    w_fc = jax.random.uniform(keys[4], (NUM_CLASSES, OUTPUT_SIZE), jnp.float32, -k, k)
    b_fc = jax.random.uniform(keys[5], (NUM_CLASSES,), jnp.float32, -k, k)
    return (w_ih, w_hh, b_ih, b_hh, w_fc, b_fc)


def reference_forward(params, hidden, x, seq_len):
    """Pure-JAX reference, identical to the PyTorch module semantics."""
    w_ih, w_hh, b_ih, b_hh, w_fc, b_fc = params
    x3 = x.reshape(BATCH_SIZE, seq_len, INPUT_SIZE)
    h = hidden[0]
    ys = []
    for t in range(seq_len):
        h = jnp.tanh(x3[:, t, :] @ w_ih.T + b_ih + h @ w_hh.T + b_hh)
        ys.append(h @ w_fc.T + b_fc)
    return h, jnp.concatenate(ys, axis=0)


if __name__ == "__main__":
    key = jax.random.PRNGKey(0)
    k_param, k_x, k_h, k_x2, k_h2 = jax.random.split(key, 5)

    params = init_params(k_param)
    packed = jax.tree.map(jax.block_until_ready, pack_params(params))  # pack ONCE

    # --- Module-spec shapes: batch=1, seq=1, input=hidden=classes=5 -----------
    forward = make_rnn_forward(SEQ_LEN)
    x = jax.random.normal(k_x, (BATCH_SIZE, SEQ_LEN, INPUT_SIZE), jnp.float32)
    hidden = jax.random.normal(k_h, (NUM_LAYER, BATCH_SIZE, OUTPUT_SIZE), jnp.float32)

    hidden_out, out = forward(hidden, x, packed)
    jax.block_until_ready((hidden_out, out))

    h_ref, y_ref = reference_forward(params, hidden, x, SEQ_LEN)
    assert hidden_out.shape == (NUM_LAYER, BATCH_SIZE, OUTPUT_SIZE)
    assert out.shape == (BATCH_SIZE * SEQ_LEN, NUM_CLASSES)
    assert jnp.allclose(hidden_out[0], h_ref, atol=1e-5)
    assert jnp.allclose(out, y_ref, atol=1e-5)

    # --- Multi-chunk sanity check of the streamed-S grid (seq=20, ts=8 -> 3 chunks)
    seq_long = 20
    forward_long = make_rnn_forward(seq_long, ts=8)
    x_l = jax.random.normal(k_x2, (BATCH_SIZE, seq_long, INPUT_SIZE), jnp.float32)
    hidden_l = jax.random.normal(k_h2, (NUM_LAYER, BATCH_SIZE, OUTPUT_SIZE), jnp.float32)

    hidden_out_l, out_l = forward_long(hidden_l, x_l, packed)
    jax.block_until_ready((hidden_out_l, out_l))

    h_ref_l, y_ref_l = reference_forward(params, hidden_l, x_l, seq_long)
    assert out_l.shape == (BATCH_SIZE * seq_long, NUM_CLASSES)
    assert jnp.allclose(hidden_out_l[0], h_ref_l, atol=1e-4)
    assert jnp.allclose(out_l, y_ref_l, atol=1e-4)

    print("KERNEL_OK")
</pallas_src>

<mosaic_0001>
module attributes {stable_mosaic.version = 11 : i64} {
  func.func @rnn_fc_kernel(%arg0: i32, %arg1: memref<8x128xf32, #tpu.memory_space<vmem>>, %arg2: memref<8x128xf32, #tpu.memory_space<vmem>>, %arg3: memref<384x128xf32, #tpu.memory_space<vmem>>, %arg4: memref<8x128xf32, #tpu.memory_space<vmem>>, %arg5: memref<8x128xf32, #tpu.memory_space<vmem>>, %arg6: memref<8x128xf32, #tpu.memory_space<vmem>>, %arg7: memref<8x128xf32, #tpu.memory_space<vmem>>, %arg8: memref<8x128xf32, #tpu.memory_space<vmem>>) attributes {dimension_semantics = [#tpu.dimension_semantics<arbitrary>], iteration_bounds = array<i64: 1>, scalar_prefetch = 0 : i64, scratch_operands = 2 : i64, tpu.core_type = #tpu.core_type<tc>, window_params = [{transform_indices = @transform_0, window_bounds = array<i64: 8, 128>}, {pipeline_mode = #tpu.pipeline_mode<synchronous>, transform_indices = @transform_1, window_bounds = array<i64: 8, 128>}, {pipeline_mode = #tpu.pipeline_mode<synchronous>, transform_indices = @transform_2, window_bounds = array<i64: 384, 128>}, {pipeline_mode = #tpu.pipeline_mode<synchronous>, transform_indices = @transform_3, window_bounds = array<i64: 8, 128>}, {pipeline_mode = #tpu.pipeline_mode<synchronous>, transform_indices = @transform_4, window_bounds = array<i64: 8, 128>}, {transform_indices = @transform_5, window_bounds = array<i64: 8, 128>}]} {
    %c0_i32 = arith.constant 0 : i32
    %0 = arith.cmpi eq, %arg0, %c0_i32 : i32
    %1 = arith.extui %0 : i1 to i32
    %c0_i32_0 = arith.constant 0 : i32
    %2 = arith.cmpi ne, %1, %c0_i32_0 : i32
    scf.if %2 {
      %c0_62 = arith.constant 0 : index
      %c0_63 = arith.constant 0 : index
      %159 = vector.load %arg2[%c0_62, %c0_63] : memref<8x128xf32, #tpu.memory_space<vmem>>, vector<8x128xf32>
      %c0_64 = arith.constant 0 : index
      %c0_65 = arith.constant 0 : index
      %160 = vector.load %arg5[%c0_64, %c0_65] : memref<8x128xf32, #tpu.memory_space<vmem>>, vector<8x128xf32>
      tpu.vector_store %arg5[%c0_64, %c0_65], %159 {strides = array<i32>} : memref<8x128xf32, #tpu.memory_space<vmem>>, vector<8x128xf32>,
    } else {
    }
    %c0 = arith.constant 0 : index
    %c0_1 = arith.constant 0 : index
    %3 = vector.load %arg1[%c0, %c0_1] : memref<8x128xf32, #tpu.memory_space<vmem>>, vector<8x128xf32>
    %c0_2 = arith.constant 0 : index
    %c0_3 = arith.constant 0 : index
    %4 = vector.load %arg3[%c0_2, %c0_3] : memref<384x128xf32, #tpu.memory_space<vmem>>, vector<128x128xf32>
    %cst = arith.constant dense<0.000000e+00> : vector<8x128xf32>
    %5 = tpu.matmul %3, %4, %cst {dimension_numbers = #tpu.dot_dimension_numbers<[1], [0], [0], [1], [0, 0, 1, 1], [], []>} : vector<8x128xf32>, vector<128x128xf32>, vector<8x128xf32> -> vector<8x128xf32>
    %c0_4 = arith.constant 0 : index
    %c0_5 = arith.constant 0 : index
    %6 = vector.load %arg4[%c0_4, %c0_5] : memref<8x128xf32, #tpu.memory_space<vmem>>, vector<1x128xf32>
    %7 = vector.broadcast %6 : vector<1x128xf32> to vector<8x128xf32>
    %8 = arith.addf %5, %7 : vector<8x128xf32>
    %c0_6 = arith.constant 0 : index
    %c0_7 = arith.constant 0 : index
    %9 = vector.load %arg7[%c0_6, %c0_7] : memref<8x128xf32, #tpu.memory_space<vmem>>, vector<8x128xf32>
    tpu.vector_store %arg7[%c0_6, %c0_7], %8 {strides = array<i32>} : memref<8x128xf32, #tpu.memory_space<vmem>>, vector<8x128xf32>,
    %c128 = arith.constant 128 : index
    %c0_8 = arith.constant 0 : index
    %10 = vector.load %arg3[%c128, %c0_8] : memref<384x128xf32, #tpu.memory_space<vmem>>, vector<128x128xf32>
    %c8_i32 = arith.constant 8 : i32
    %11 = arith.muli %arg0, %c8_i32 : i32
    %c0_9 = arith.constant 0 : index
    %c0_10 = arith.constant 0 : index
    %12 = vector.load %arg5[%c0_9, %c0_10] : memref<8x128xf32, #tpu.memory_space<vmem>>, vector<1x128xf32>
    %c0_i32_11 = arith.constant 0 : i32
    %13 = arith.index_cast %c0_i32_11 : i32 to index
    %c0_12 = arith.constant 0 : index
    %14 = vector.load %arg7[%13, %c0_12] : memref<8x128xf32, #tpu.memory_space<vmem>>, vector<1x128xf32>
    %cst_13 = arith.constant dense<0.000000e+00> : vector<1x128xf32>
    %15 = tpu.matmul %12, %10, %cst_13 {dimension_numbers = #tpu.dot_dimension_numbers<[1], [0], [0], [1], [0, 0, 1, 1], [], []>} : vector<1x128xf32>, vector<128x128xf32>, vector<1x128xf32> -> vector<1x128xf32>
    %16 = arith.addf %14, %15 : vector<1x128xf32>
    %17 = arith.addi %11, %c0_i32_11 : i32
    %c1_i32 = arith.constant 1 : i32
    %18 = arith.cmpi slt, %17, %c1_i32 : i32
    %19 = arith.extui %18 : i1 to i32
    %20 = arith.sitofp %19 : i32 to f32
    %21 = math.tanh %16 : vector<1x128xf32>
    %22 = vector.broadcast %20 : f32 to vector<1x128xf32>
    %23 = arith.mulf %22, %21 : vector<1x128xf32>
    %cst_14 = arith.constant 1.000000e+00 : f32
    %24 = arith.subf %cst_14, %20 : f32
    %25 = vector.broadcast %24 : f32 to vector<1x128xf32>
    %26 = arith.mulf %25, %12 : vector<1x128xf32>
    %27 = arith.addf %23, %26 : vector<1x128xf32>
    %28 = arith.index_cast %c0_i32_11 : i32 to index
    %c0_15 = arith.constant 0 : index
    %29 = vector.load %arg8[%28, %c0_15] : memref<8x128xf32, #tpu.memory_space<vmem>>, vector<1x128xf32>
    tpu.vector_store %arg8[%28, %c0_15], %27 {strides = array<i32>} : memref<8x128xf32, #tpu.memory_space<vmem>>, vector<1x128xf32>,
    %c1_i32_16 = arith.constant 1 : i32
    %30 = arith.index_cast %c1_i32_16 : i32 to index
    %c0_17 = arith.constant 0 : index
    %31 = vector.load %arg7[%30, %c0_17] : memref<8x128xf32, #tpu.memory_space<vmem>>, vector<1x128xf32>
    %cst_18 = arith.constant dense<0.000000e+00> : vector<1x128xf32>
    %32 = tpu.matmul %27, %10, %cst_18 {dimension_numbers = #tpu.dot_dimension_numbers<[1], [0], [0], [1], [0, 0, 1, 1], [], []>} : vector<1x128xf32>, vector<128x128xf32>, vector<1x128xf32> -> vector<1x128xf32>
    %33 = arith.addf %31, %32 : vector<1x128xf32>
    %34 = arith.addi %11, %c1_i32_16 : i32
    %c1_i32_19 = arith.constant 1 : i32
    %35 = arith.cmpi slt, %34, %c1_i32_19 : i32
    %36 = arith.extui %35 : i1 to i32
    %37 = arith.sitofp %36 : i32 to f32
    %38 = math.tanh %33 : vector<1x128xf32>
    %39 = vector.broadcast %37 : f32 to vector<1x128xf32>
    %40 = arith.mulf %39, %38 : vector<1x128xf32>
    %cst_20 = arith.constant 1.000000e+00 : f32
    %41 = arith.subf %cst_20, %37 : f32
    %42 = vector.broadcast %41 : f32 to vector<1x128xf32>
    %43 = arith.mulf %42, %27 : vector<1x128xf32>
    %44 = arith.addf %40, %43 : vector<1x128xf32>
    %45 = arith.index_cast %c1_i32_16 : i32 to index
    %c0_21 = arith.constant 0 : index
    %46 = vector.load %arg8[%45, %c0_21] : memref<8x128xf32, #tpu.memory_space<vmem>>, vector<1x128xf32>
    tpu.vector_store %arg8[%45, %c0_21], %44 {strides = array<i32>} : memref<8x128xf32, #tpu.memory_space<vmem>>, vector<1x128xf32>,
    %c2_i32 = arith.constant 2 : i32
    %47 = arith.index_cast %c2_i32 : i32 to index
    %c0_22 = arith.constant 0 : index
    %48 = vector.load %arg7[%47, %c0_22] : memref<8x128xf32, #tpu.memory_space<vmem>>, vector<1x128xf32>
    %cst_23 = arith.constant dense<0.000000e+00> : vector<1x128xf32>
    %49 = tpu.matmul %44, %10, %cst_23 {dimension_numbers = #tpu.dot_dimension_numbers<[1], [0], [0], [1], [0, 0, 1, 1], [], []>} : vector<1x128xf32>, vector<128x128xf32>, vector<1x128xf32> -> vector<1x128xf32>
    %50 = arith.addf %48, %49 : vector<1x128xf32>
    %51 = arith.addi %11, %c2_i32 : i32
    %c1_i32_24 = arith.constant 1 : i32
    %52 = arith.cmpi slt, %51, %c1_i32_24 : i32
    %53 = arith.extui %52 : i1 to i32
    %54 = arith.sitofp %53 : i32 to f32
    %55 = math.tanh %50 : vector<1x128xf32>
    %56 = vector.broadcast %54 : f32 to vector<1x128xf32>
    %57 = arith.mulf %56, %55 : vector<1x128xf32>
    %cst_25 = arith.constant 1.000000e+00 : f32
    %58 = arith.subf %cst_25, %54 : f32
    %59 = vector.broadcast %58 : f32 to vector<1x128xf32>
    %60 = arith.mulf %59, %44 : vector<1x128xf32>
    %61 = arith.addf %57, %60 : vector<1x128xf32>
    %62 = arith.index_cast %c2_i32 : i32 to index
    %c0_26 = arith.constant 0 : index
    %63 = vector.load %arg8[%62, %c0_26] : memref<8x128xf32, #tpu.memory_space<vmem>>, vector<1x128xf32>
    tpu.vector_store %arg8[%62, %c0_26], %61 {strides = array<i32>} : memref<8x128xf32, #tpu.memory_space<vmem>>, vector<1x128xf32>,
    %c3_i32 = arith.constant 3 : i32
    %64 = arith.index_cast %c3_i32 : i32 to index
    %c0_27 = arith.constant 0 : index
    %65 = vector.load %arg7[%64, %c0_27] : memref<8x128xf32, #tpu.memory_space<vmem>>, vector<1x128xf32>
    %cst_28 = arith.constant dense<0.000000e+00> : vector<1x128xf32>
    %66 = tpu.matmul %61, %10, %cst_28 {dimension_numbers = #tpu.dot_dimension_numbers<[1], [0], [0], [1], [0, 0, 1, 1], [], []>} : vector<1x128xf32>, vector<128x128xf32>, vector<1x128xf32> -> vector<1x128xf32>
    %67 = arith.addf %65, %66 : vector<1x128xf32>
    %68 = arith.addi %11, %c3_i32 : i32
    %c1_i32_29 = arith.constant 1 : i32
    %69 = arith.cmpi slt, %68, %c1_i32_29 : i32
    %70 = arith.extui %69 : i1 to i32
    %71 = arith.sitofp %70 : i32 to f32
    %72 = math.tanh %67 : vector<1x128xf32>
    %73 = vector.broadcast %71 : f32 to vector<1x128xf32>
    %74 = arith.mulf %73, %72 : vector<1x128xf32>
    %cst_30 = arith.constant 1.000000e+00 : f32
    %75 = arith.subf %cst_30, %71 : f32
    %76 = vector.broadcast %75 : f32 to vector<1x128xf32>
    %77 = arith.mulf %76, %61 : vector<1x128xf32>
    %78 = arith.addf %74, %77 : vector<1x128xf32>
    %79 = arith.index_cast %c3_i32 : i32 to index
    %c0_31 = arith.constant 0 : index
    %80 = vector.load %arg8[%79, %c0_31] : memref<8x128xf32, #tpu.memory_space<vmem>>, vector<1x128xf32>
    tpu.vector_store %arg8[%79, %c0_31], %78 {strides = array<i32>} : memref<8x128xf32, #tpu.memory_space<vmem>>, vector<1x128xf32>,
    %c4_i32 = arith.constant 4 : i32
    %81 = arith.index_cast %c4_i32 : i32 to index
    %c0_32 = arith.constant 0 : index
    %82 = vector.load %arg7[%81, %c0_32] : memref<8x128xf32, #tpu.memory_space<vmem>>, vector<1x128xf32>
    %cst_33 = arith.constant dense<0.000000e+00> : vector<1x128xf32>
    %83 = tpu.matmul %78, %10, %cst_33 {dimension_numbers = #tpu.dot_dimension_numbers<[1], [0], [0], [1], [0, 0, 1, 1], [], []>} : vector<1x128xf32>, vector<128x128xf32>, vector<1x128xf32> -> vector<1x128xf32>
    %84 = arith.addf %82, %83 : vector<1x128xf32>
    %85 = arith.addi %11, %c4_i32 : i32
    %c1_i32_34 = arith.constant 1 : i32
    %86 = arith.cmpi slt, %85, %c1_i32_34 : i32
    %87 = arith.extui %86 : i1 to i32
    %88 = arith.sitofp %87 : i32 to f32
    %89 = math.tanh %84 : vector<1x128xf32>
    %90 = vector.broadcast %88 : f32 to vector<1x128xf32>
    %91 = arith.mulf %90, %89 : vector<1x128xf32>
    %cst_35 = arith.constant 1.000000e+00 : f32
    %92 = arith.subf %cst_35, %88 : f32
    %93 = vector.broadcast %92 : f32 to vector<1x128xf32>
    %94 = arith.mulf %93, %78 : vector<1x128xf32>
    %95 = arith.addf %91, %94 : vector<1x128xf32>
    %96 = arith.index_cast %c4_i32 : i32 to index
    %c0_36 = arith.constant 0 : index
    %97 = vector.load %arg8[%96, %c0_36] : memref<8x128xf32, #tpu.memory_space<vmem>>, vector<1x128xf32>
    tpu.vector_store %arg8[%96, %c0_36], %95 {strides = array<i32>} : memref<8x128xf32, #tpu.memory_space<vmem>>, vector<1x128xf32>,
    %c5_i32 = arith.constant 5 : i32
    %98 = arith.index_cast %c5_i32 : i32 to index
    %c0_37 = arith.constant 0 : index
    %99 = vector.load %arg7[%98, %c0_37] : memref<8x128xf32, #tpu.memory_space<vmem>>, vector<1x128xf32>
    %cst_38 = arith.constant dense<0.000000e+00> : vector<1x128xf32>
    %100 = tpu.matmul %95, %10, %cst_38 {dimension_numbers = #tpu.dot_dimension_numbers<[1], [0], [0], [1], [0, 0, 1, 1], [], []>} : vector<1x128xf32>, vector<128x128xf32>, vector<1x128xf32> -> vector<1x128xf32>
    %101 = arith.addf %99, %100 : vector<1x128xf32>
    %102 = arith.addi %11, %c5_i32 : i32
    %c1_i32_39 = arith.constant 1 : i32
    %103 = arith.cmpi slt, %102, %c1_i32_39 : i32
    %104 = arith.extui %103 : i1 to i32
    %105 = arith.sitofp %104 : i32 to f32
    %106 = math.tanh %101 : vector<1x128xf32>
    %107 = vector.broadcast %105 : f32 to vector<1x128xf32>
    %108 = arith.mulf %107, %106 : vector<1x128xf32>
    %cst_40 = arith.constant 1.000000e+00 : f32
    %109 = arith.subf %cst_40, %105 : f32
    %110 = vector.broadcast %109 : f32 to vector<1x128xf32>
    %111 = arith.mulf %110, %95 : vector<1x128xf32>
    %112 = arith.addf %108, %111 : vector<1x128xf32>
    %113 = arith.index_cast %c5_i32 : i32 to index
    %c0_41 = arith.constant 0 : index
    %114 = vector.load %arg8[%113, %c0_41] : memref<8x128xf32, #tpu.memory_space<vmem>>, vector<1x128xf32>
    tpu.vector_store %arg8[%113, %c0_41], %112 {strides = array<i32>} : memref<8x128xf32, #tpu.memory_space<vmem>>, vector<1x128xf32>,
    %c6_i32 = arith.constant 6 : i32
    %115 = arith.index_cast %c6_i32 : i32 to index
    %c0_42 = arith.constant 0 : index
    %116 = vector.load %arg7[%115, %c0_42] : memref<8x128xf32, #tpu.memory_space<vmem>>, vector<1x128xf32>
    %cst_43 = arith.constant dense<0.000000e+00> : vector<1x128xf32>
    %117 = tpu.matmul %112, %10, %cst_43 {dimension_numbers = #tpu.dot_dimension_numbers<[1], [0], [0], [1], [0, 0, 1, 1], [], []>} : vector<1x128xf32>, vector<128x128xf32>, vector<1x128xf32> -> vector<1x128xf32>
    %118 = arith.addf %116, %117 : vector<1x128xf32>
    %119 = arith.addi %11, %c6_i32 : i32
    %c1_i32_44 = arith.constant 1 : i32
    %120 = arith.cmpi slt, %119, %c1_i32_44 : i32
    %121 = arith.extui %120 : i1 to i32
    %122 = arith.sitofp %121 : i32 to f32
    %123 = math.tanh %118 : vector<1x128xf32>
    %124 = vector.broadcast %122 : f32 to vector<1x128xf32>
    %125 = arith.mulf %124, %123 : vector<1x128xf32>
    %cst_45 = arith.constant 1.000000e+00 : f32
    %126 = arith.subf %cst_45, %122 : f32
    %127 = vector.broadcast %126 : f32 to vector<1x128xf32>
    %128 = arith.mulf %127, %112 : vector<1x128xf32>
    %129 = arith.addf %125, %128 : vector<1x128xf32>
    %130 = arith.index_cast %c6_i32 : i32 to index
    %c0_46 = arith.constant 0 : index
    %131 = vector.load %arg8[%130, %c0_46] : memref<8x128xf32, #tpu.memory_space<vmem>>, vector<1x128xf32>
    tpu.vector_store %arg8[%130, %c0_46], %129 {strides = array<i32>} : memref<8x128xf32, #tpu.memory_space<vmem>>, vector<1x128xf32>,
    %c7_i32 = arith.constant 7 : i32
    %132 = arith.index_cast %c7_i32 : i32 to index
    %c0_47 = arith.constant 0 : index
    %133 = vector.load %arg7[%132, %c0_47] : memref<8x128xf32, #tpu.memory_space<vmem>>, vector<1x128xf32>
    %cst_48 = arith.constant dense<0.000000e+00> : vector<1x128xf32>
    %134 = tpu.matmul %129, %10, %cst_48 {dimension_numbers = #tpu.dot_dimension_numbers<[1], [0], [0], [1], [0, 0, 1, 1], [], []>} : vector<1x128xf32>, vector<128x128xf32>, vector<1x128xf32> -> vector<1x128xf32>
    %135 = arith.addf %133, %134 : vector<1x128xf32>
    %136 = arith.addi %11, %c7_i32 : i32
    %c1_i32_49 = arith.constant 1 : i32
    %137 = arith.cmpi slt, %136, %c1_i32_49 : i32
    %138 = arith.extui %137 : i1 to i32
    %139 = arith.sitofp %138 : i32 to f32
    %140 = math.tanh %135 : vector<1x128xf32>
    %141 = vector.broadcast %139 : f32 to vector<1x128xf32>
    %142 = arith.mulf %141, %140 : vector<1x128xf32>
    %cst_50 = arith.constant 1.000000e+00 : f32
    %143 = arith.subf %cst_50, %139 : f32
    %144 = vector.broadcast %143 : f32 to vector<1x128xf32>
    %145 = arith.mulf %144, %129 : vector<1x128xf32>
    %146 = arith.addf %142, %145 : vector<1x128xf32>
    %147 = arith.index_cast %c7_i32 : i32 to index
    %c0_51 = arith.constant 0 : index
    %148 = vector.load %arg8[%147, %c0_51] : memref<8x128xf32, #tpu.memory_space<vmem>>, vector<1x128xf32>
    tpu.vector_store %arg8[%147, %c0_51], %146 {strides = array<i32>} : memref<8x128xf32, #tpu.memory_space<vmem>>, vector<1x128xf32>,
    %c8_i32_52 = arith.constant 8 : i32
    %149 = vector.shape_cast %146 : vector<1x128xf32> to vector<1x128xf32>
    %150 = vector.broadcast %149 : vector<1x128xf32> to vector<8x128xf32>
    %c0_53 = arith.constant 0 : index
    %c0_54 = arith.constant 0 : index
    %151 = vector.load %arg5[%c0_53, %c0_54] : memref<8x128xf32, #tpu.memory_space<vmem>>, vector<8x128xf32>
    tpu.vector_store %arg5[%c0_53, %c0_54], %150 {strides = array<i32>} : memref<8x128xf32, #tpu.memory_space<vmem>>, vector<8x128xf32>,
    %c0_55 = arith.constant 0 : index
    %c0_56 = arith.constant 0 : index
    %152 = vector.load %arg8[%c0_55, %c0_56] : memref<8x128xf32, #tpu.memory_space<vmem>>, vector<8x128xf32>
    %c256 = arith.constant 256 : index
    %c0_57 = arith.constant 0 : index
    %153 = vector.load %arg3[%c256, %c0_57] : memref<384x128xf32, #tpu.memory_space<vmem>>, vector<128x128xf32>
    %cst_58 = arith.constant dense<0.000000e+00> : vector<8x128xf32>
    %154 = tpu.matmul %152, %153, %cst_58 {dimension_numbers = #tpu.dot_dimension_numbers<[1], [0], [0], [1], [0, 0, 1, 1], [], []>} : vector<8x128xf32>, vector<128x128xf32>, vector<8x128xf32> -> vector<8x128xf32>
    %c1 = arith.constant 1 : index
    %c0_59 = arith.constant 0 : index
    %155 = vector.load %arg4[%c1, %c0_59] : memref<8x128xf32, #tpu.memory_space<vmem>>, vector<1x128xf32>
    %156 = vector.broadcast %155 : vector<1x128xf32> to vector<8x128xf32>
    %157 = arith.addf %154, %156 : vector<8x128xf32>
    %c0_60 = arith.constant 0 : index
    %c0_61 = arith.constant 0 : index
    %158 = vector.load %arg6[%c0_60, %c0_61] : memref<8x128xf32, #tpu.memory_space<vmem>>, vector<8x128xf32>
    tpu.vector_store %arg6[%c0_60, %c0_61], %157 {strides = array<i32>} : memref<8x128xf32, #tpu.memory_space<vmem>>, vector<8x128xf32>,
    return
  }
  func.func @transform_0(%arg0: i32) -> (i32, i32) {
    %c0_i32 = arith.constant 0 : i32
    %c0_i32_0 = arith.constant 0 : i32
    return %arg0, %c0_i32 : i32, i32
  }
  func.func @transform_1(%arg0: i32) -> (i32, i32) {
    %c0_i32 = arith.constant 0 : i32
    %c0_i32_0 = arith.constant 0 : i32
    %c0_i32_1 = arith.constant 0 : i32
    return %c0_i32, %c0_i32_0 : i32, i32
  }
  func.func @transform_2(%arg0: i32) -> (i32, i32) {
    %c0_i32 = arith.constant 0 : i32
    %c0_i32_0 = arith.constant 0 : i32
    %c0_i32_1 = arith.constant 0 : i32
    return %c0_i32, %c0_i32_0 : i32, i32
  }
  func.func @transform_3(%arg0: i32) -> (i32, i32) {
    %c0_i32 = arith.constant 0 : i32
    %c0_i32_0 = arith.constant 0 : i32
    %c0_i32_1 = arith.constant 0 : i32
    return %c0_i32, %c0_i32_0 : i32, i32
  }
  func.func @transform_4(%arg0: i32) -> (i32, i32) {
    %c0_i32 = arith.constant 0 : i32
    %c0_i32_0 = arith.constant 0 : i32
    %c0_i32_1 = arith.constant 0 : i32
    return %c0_i32, %c0_i32_0 : i32, i32
  }
  func.func @transform_5(%arg0: i32) -> (i32, i32) {
    %c0_i32 = arith.constant 0 : i32
    %c0_i32_0 = arith.constant 0 : i32
    return %arg0, %c0_i32 : i32, i32
  }
}

</mosaic_0001>

<llo_original>
// kernel: forward.1
$region0: #{forward.1}
  #allocation0 [shape = 'u32[]', space=smem, size = 0x4, offset = 0x4, fixed_abs, tag = 'smem constant byte address 0x4 - core index']
  #allocation1 [shape = 'u32[144,128]{1,0:T(1,128)}', space=vmem, size = 0x12000, scoped, tag = 'internal scratch']
  #allocation2 [shape = 'f32[8,128]{1,0:T(8,128)}', space=vmem, size = 0x1000, scoped, tag = 'scratch operand']
  #allocation3 [shape = 'f32[8,128]{1,0:T(8,128)}', space=vmem, size = 0x1000, scoped, tag = 'scratch operand']
  %s0 = inlined_call_operand.vmem [shape: f32[8,128], index: 0, kind: input, shape index: {}]
  %s1 = inlined_call_operand.vmem [shape: f32[8,128], index: 1, kind: input, shape index: {}, may-alias: {1,4}]
  %s2 = inlined_call_operand.hbm [shape: f32[384,128], index: 2, kind: input, shape index: {}]
  %s3 = inlined_call_operand.vmem [shape: f32[8,128], index: 3, kind: input, shape index: {}]
  %s4 = inlined_call_operand.vmem [shape: f32[8,128], index: 4, kind: output, shape index: {0}, may-alias: {1,4}]
  %s5 = inlined_call_operand.vmem [shape: f32[8,128], index: 5, kind: output, shape index: {1}]
  %6 = xla_tuple %s4, %s5
  %s7 = sld [smem:[#allocation0]]
  $region42: #{forward.1} parent=0
    _
  %s9 = ssub.s32 1, %s7
  %s10 = scalar_select 0, %s9, %s7
  $region1: #{forward.1} parent=0
    #allocation4 [shape = 'u8[196608]{0}', space=vmem, size = 0x30000, scoped, tag = 'input window, operand 2, single buffered']
    #allocation5 [shape = 's32[1]{0}', space=sflag, size = 0x4, scoped, tag = 'scoped memory for forward.1']
    %11 = vsyncpa [#allocation5], 0
    // Predicated region
    $region2: #{forward.1} parent=1 // pred_check
      _
    $region3: #{forward.1} parent=1 // pred_check_branch
      %13 = sbr.rel (0) target = $region5
    $region4: #{forward.1} parent=1 // pred_region
      _
    $region5: #{forward.1} parent=1 // pred_fallthru
      _
    // Predicated region
    $region6: #{forward.1} parent=1 // pred_check
      _
    $region7: #{forward.1} parent=1 // pred_check_branch
      %15 = sbr.rel (0) target = $region9
    $region8: #{forward.1} parent=1 // pred_region
      _
    $region9: #{forward.1} parent=1 // pred_fallthru
      _
    // Predicated region
    $region10: #{forward.1} parent=1 // pred_check
      _
    $region11: #{forward.1} parent=1 // pred_check_branch
      %17 = sbr.rel (0) target = $region13
    $region12: #{forward.1} parent=1 // pred_region
      %s19 = ssub.s32 6144, 6144
      %20 = vsyncadd [#allocation5], %s19
      %s21 = sshll.u32 [#allocation4], 4
      %s22 = int_to_ptr.vmem [resolvable:$true] %s21
      %27 = dma.hbm_to_vmem [thread:$0]  %s2, 6144, %s22, [#allocation5], 128, 128, 8
    $region13: #{forward.1} parent=1 // pred_fallthru
      _
    // Predicated region
    $region14: #{forward.1} parent=1 // pred_check
      _
    $region15: #{forward.1} parent=1 // pred_check_branch
      %29 = sbr.rel (0) target = $region17
    $region16: #{forward.1} parent=1 // pred_region
      _
    $region17: #{forward.1} parent=1 // pred_fallthru
      _
    // Predicated region
    $region18: #{forward.1} parent=1 // pred_check
      _
    $region19: #{forward.1} parent=1 // pred_check_branch
      %31 = sbr.rel (0) target = $region21
    $region20: #{forward.1} parent=1 // pred_region
      %32 = dma.done [#allocation5], 6144
    $region21: #{forward.1} parent=1 // pred_fallthru
      _
    %p33 = scmp.eq.s32.totalorder 0, 0
    // Predicated region
    $region22: #{forward.1} parent=1 // pred_check
      %p34 = pneg %p33
    $region23: #{forward.1} parent=1 // pred_check_branch
      %36 = sbr.rel (%p34) target = $region25
    $region24: #{forward.1} parent=1 // pred_region
      %v37 = vld [vmem:[%s1] sm:$0xff]
      %38 = vst [vmem:[%s4] sm:$0xff] %v37
    $region25: #{forward.1} parent=1 // pred_fallthru
      _
    %v39 = vld [vmem:[%s0] sm:$0xff]
    %v40 = vld [vmem:[#allocation4] sm:$0xff]
    %v41 = vld [vmem:[#allocation4 + $0x8] sm:$0xff]
    %v42 = vld [vmem:[#allocation4 + $0x10] sm:$0xff]
    %v43 = vld [vmem:[#allocation4 + $0x18] sm:$0xff]
    %v44 = vld [vmem:[#allocation4 + $0x20] sm:$0xff]
    %v45 = vld [vmem:[#allocation4 + $0x28] sm:$0xff]
    %v46 = vld [vmem:[#allocation4 + $0x30] sm:$0xff]
    %v47 = vld [vmem:[#allocation4 + $0x38] sm:$0xff]
    %v48 = vld [vmem:[#allocation4 + $0x40] sm:$0xff]
    %v49 = vld [vmem:[#allocation4 + $0x48] sm:$0xff]
    %v50 = vld [vmem:[#allocation4 + $0x50] sm:$0xff]
    %v51 = vld [vmem:[#allocation4 + $0x58] sm:$0xff]
    %v52 = vld [vmem:[#allocation4 + $0x60] sm:$0xff]
    %v53 = vld [vmem:[#allocation4 + $0x68] sm:$0xff]
    %v54 = vld [vmem:[#allocation4 + $0x70] sm:$0xff]
    %v55 = vld [vmem:[#allocation4 + $0x78] sm:$0xff]
    %v56 = vld [vmem:[%s3] sm:$0x1]
    %v57 = vlaneseq
    %v58 = vshrl.u32 %v57, 7
    %v59 = vsub.s32 0, %v58
    %v60 = vrot.slane %v56, %v59
    %61 = vmatprep.subr.mxu0 0.0
    %62 = vmatpush1.msra.mxu0 %v55
    %63 = vmatprep.subr.mxu0 0.0
    %64 = vmatpush1.msra.mxu0 %v54
    %65 = vmatprep.subr.mxu0 0.0
    %66 = vmatpush1.msra.mxu0 %v53
    %67 = vmatprep.subr.mxu0 0.0
    %68 = vmatpush1.msra.mxu0 %v52
    %69 = vmatprep.subr.mxu0 0.0
    %70 = vmatpush1.msra.mxu0 %v51
    %71 = vmatprep.subr.mxu0 0.0
    %72 = vmatpush1.msra.mxu0 %v50
    %73 = vmatprep.subr.mxu0 0.0
    %74 = vmatpush1.msra.mxu0 %v49
    %75 = vmatprep.subr.mxu0 0.0
    %76 = vmatpush1.msra.mxu0 %v48
    %77 = vmatprep.subr.mxu0 0.0
    %78 = vmatpush1.msra.mxu0 %v47
    %79 = vmatprep.subr.mxu0 0.0
    %80 = vmatpush1.msra.mxu0 %v46
    %81 = vmatprep.subr.mxu0 0.0
    %82 = vmatpush1.msra.mxu0 %v45
    %83 = vmatprep.subr.mxu0 0.0
    %84 = vmatpush1.msra.mxu0 %v44
    %85 = vmatprep.subr.mxu0 0.0
    %86 = vmatpush1.msra.mxu0 %v43
    %87 = vmatprep.subr.mxu0 0.0
    %88 = vmatpush1.msra.mxu0 %v42
    %89 = vmatprep.subr.mxu0 0.0
    %90 = vmatpush1.msra.mxu0 %v41
    %91 = vmatprep.subr.mxu0 0.0
    %92 = vmatpush1.msra.mxu0 %v40
    %93 = vmatprep.subr.mxu0 0.0
    %94 = vmatpush2.msra.mxu0 0.0
    %95 = vmatprep.subr.mxu0 0.0
    %96 = vmatpush2.msra.mxu0 0.0
    %97 = vmatprep.subr.mxu0 0.0
    %98 = vmatpush2.msra.mxu0 0.0
    %99 = vmatprep.subr.mxu0 0.0
    %100 = vmatpush2.msra.mxu0 0.0
    %101 = vmatprep.subr.mxu0 0.0
    %102 = vmatpush2.msra.mxu0 0.0
    %103 = vmatprep.subr.mxu0 0.0
    %104 = vmatpush2.msra.mxu0 0.0
    %105 = vmatprep.subr.mxu0 0.0
    %106 = vmatpush2.msra.mxu0 0.0
    %107 = vmatprep.subr.mxu0 0.0
    %108 = vmatpush2.msra.mxu0 0.0
    %109 = vmatprep.subr.mxu0 0.0
    %110 = vmatpush2.msra.mxu0 0.0
    %111 = vmatprep.subr.mxu0 0.0
    %112 = vmatpush2.msra.mxu0 0.0
    %113 = vmatprep.subr.mxu0 0.0
    %114 = vmatpush2.msra.mxu0 0.0
    %115 = vmatprep.subr.mxu0 0.0
    %116 = vmatpush2.msra.mxu0 0.0
    %117 = vmatprep.subr.mxu0 0.0
    %118 = vmatpush2.msra.mxu0 0.0
    %119 = vmatprep.subr.mxu0 0.0
    %120 = vmatpush2.msra.mxu0 0.0
    %121 = vmatprep.subr.mxu0 0.0
    %122 = vmatpush2.msra.mxu0 0.0
    %123 = vmatprep.subr.mxu0 0.0
    %124 = vmatpush2.msra.mxu0 0.0
    %125 = vmatprep.mubr.f32.mxu0 0.0
    %126 = vmatmul.mubr.f32.gmra.mxu0 %v39
    %v127 = vpop.f32.mrf.mxu0
    %v128 = vadd.f32 %v60, %v127
    %v129 = vpop.f32.mrf.mxu0
    %130 = vdwg.mxu0
    %131 = vst [vmem:[#allocation2] sm:$0xff] %v128
    %v132 = vld [vmem:[#allocation4 + $0x80] sm:$0xff]
    %v133 = vld [vmem:[#allocation4 + $0x88] sm:$0xff]
    %v134 = vld [vmem:[#allocation4 + $0x90] sm:$0xff]
    %v135 = vld [vmem:[#allocation4 + $0x98] sm:$0xff]
    %v136 = vld [vmem:[#allocation4 + $0xa0] sm:$0xff]
    %v137 = vld [vmem:[#allocation4 + $0xa8] sm:$0xff]
    %v138 = vld [vmem:[#allocation4 + $0xb0] sm:$0xff]
    %v139 = vld [vmem:[#allocation4 + $0xb8] sm:$0xff]
    %v140 = vld [vmem:[#allocation4 + $0xc0] sm:$0xff]
    %v141 = vld [vmem:[#allocation4 + $0xc8] sm:$0xff]
    %v142 = vld [vmem:[#allocation4 + $0xd0] sm:$0xff]
    %v143 = vld [vmem:[#allocation4 + $0xd8] sm:$0xff]
    %v144 = vld [vmem:[#allocation4 + $0xe0] sm:$0xff]
    %v145 = vld [vmem:[#allocation4 + $0xe8] sm:$0xff]
    %v146 = vld [vmem:[#allocation4 + $0xf0] sm:$0xff]
    %v147 = vld [vmem:[#allocation4 + $0xf8] sm:$0xff]
    %s148 = smul.u32 0, 8
    %v149 = vld [vmem:[%s4] sm:$0x1]
    %v150 = vld [vmem:[#allocation2] sm:$0x1]
    %151 = vmatprep.subr.mxu0 0.0
    %152 = vmatpush1.msra.mxu0 %v147
    %153 = vmatprep.subr.mxu0 0.0
    %154 = vmatpush1.msra.mxu0 %v146
    %155 = vmatprep.subr.mxu0 0.0
    %156 = vmatpush1.msra.mxu0 %v145
    %157 = vmatprep.subr.mxu0 0.0
    %158 = vmatpush1.msra.mxu0 %v144
    %159 = vmatprep.subr.mxu0 0.0
    %160 = vmatpush1.msra.mxu0 %v143
    %161 = vmatprep.subr.mxu0 0.0
    %162 = vmatpush1.msra.mxu0 %v142
    %163 = vmatprep.subr.mxu0 0.0
    %164 = vmatpush1.msra.mxu0 %v141
    %165 = vmatprep.subr.mxu0 0.0
    %166 = vmatpush1.msra.mxu0 %v140
    %167 = vmatprep.subr.mxu0 0.0
    %168 = vmatpush1.msra.mxu0 %v139
    %169 = vmatprep.subr.mxu0 0.0
    %170 = vmatpush1.msra.mxu0 %v138
    %171 = vmatprep.subr.mxu0 0.0
    %172 = vmatpush1.msra.mxu0 %v137
    %173 = vmatprep.subr.mxu0 0.0
    %174 = vmatpush1.msra.mxu0 %v136
    %175 = vmatprep.subr.mxu0 0.0
    %176 = vmatpush1.msra.mxu0 %v135
    %177 = vmatprep.subr.mxu0 0.0
    %178 = vmatpush1.msra.mxu0 %v134
    %179 = vmatprep.subr.mxu0 0.0
    %180 = vmatpush1.msra.mxu0 %v133
    %181 = vmatprep.subr.mxu0 0.0
    %182 = vmatpush1.msra.mxu0 %v132
    %183 = vmatprep.subr.mxu0 0.0
    %184 = vmatpush2.msra.mxu0 0.0
    %185 = vmatprep.subr.mxu0 0.0
    %186 = vmatpush2.msra.mxu0 0.0
    %187 = vmatprep.subr.mxu0 0.0
    %188 = vmatpush2.msra.mxu0 0.0
    %189 = vmatprep.subr.mxu0 0.0
    %190 = vmatpush2.msra.mxu0 0.0
    %191 = vmatprep.subr.mxu0 0.0
    %192 = vmatpush2.msra.mxu0 0.0
    %193 = vmatprep.subr.mxu0 0.0
    %194 = vmatpush2.msra.mxu0 0.0
    %195 = vmatprep.subr.mxu0 0.0
    %196 = vmatpush2.msra.mxu0 0.0
    %197 = vmatprep.subr.mxu0 0.0
    %198 = vmatpush2.msra.mxu0 0.0
    %199 = vmatprep.subr.mxu0 0.0
    %200 = vmatpush2.msra.mxu0 0.0
    %201 = vmatprep.subr.mxu0 0.0
    %202 = vmatpush2.msra.mxu0 0.0
    %203 = vmatprep.subr.mxu0 0.0
    %204 = vmatpush2.msra.mxu0 0.0
    %205 = vmatprep.subr.mxu0 0.0
    %206 = vmatpush2.msra.mxu0 0.0
    %207 = vmatprep.subr.mxu0 0.0
    %208 = vmatpush2.msra.mxu0 0.0
    %209 = vmatprep.subr.mxu0 0.0
    %210 = vmatpush2.msra.mxu0 0.0
    %211 = vmatprep.subr.mxu0 0.0
    %212 = vmatpush2.msra.mxu0 0.0
    %213 = vmatprep.subr.mxu0 0.0
    %214 = vmatpush2.msra.mxu0 0.0
    %215 = vmatprep.mubr.f32.mxu0 0.0
    %216 = vmatmul.mubr.f32.gmra.mxu0 %v149
    %v217 = vpop.f32.mrf.mxu0
    %v218 = vadd.f32 0.0, %v217
    %v219 = vpop.f32.mrf.mxu0
    %220 = vdwg.mxu0
    %v221 = vadd.f32 %v150, %v218
    %p222 = scmp.lt.s32.totalorder %s148, 1
    %s223 = scalar_select %p222, 1, 0
    %s224 = scvt.s32.f32 %s223
    %v225 = vtanh.pop %v221
    %v226 = vstv %s224
    %v227 = vmul.f32 %v226, %v225
    %s228 = ssub.f32 1.0, %s224
    %v229 = vstv %s228
    %v230 = vmul.f32 %v229, %v149
    %v231 = vadd.f32 %v227, %v230
    %232 = vst [vmem:[#allocation3] sm:$0x1] %v231
    %v233 = vld [vmem:[#allocation2 + $0x1] sm:$0x1]
    %234 = vmatprep.subr.mxu0 0.0
    %235 = vmatpush1.msra.mxu0 %v147
    %236 = vmatprep.subr.mxu0 0.0
    %237 = vmatpush1.msra.mxu0 %v146
    %238 = vmatprep.subr.mxu0 0.0
    %239 = vmatpush1.msra.mxu0 %v145
    %240 = vmatprep.subr.mxu0 0.0
    %241 = vmatpush1.msra.mxu0 %v144
    %242 = vmatprep.subr.mxu0 0.0
    %243 = vmatpush1.msra.mxu0 %v143
    %244 = vmatprep.subr.mxu0 0.0
    %245 = vmatpush1.msra.mxu0 %v142
    %246 = vmatprep.subr.mxu0 0.0
    %247 = vmatpush1.msra.mxu0 %v141
    %248 = vmatprep.subr.mxu0 0.0
    %249 = vmatpush1.msra.mxu0 %v140
    %250 = vmatprep.subr.mxu0 0.0
    %251 = vmatpush1.msra.mxu0 %v139
    %252 = vmatprep.subr.mxu0 0.0
    %253 = vmatpush1.msra.mxu0 %v138
    %254 = vmatprep.subr.mxu0 0.0
    %255 = vmatpush1.msra.mxu0 %v137
    %256 = vmatprep.subr.mxu0 0.0
    %257 = vmatpush1.msra.mxu0 %v136
    %258 = vmatprep.subr.mxu0 0.0
    %259 = vmatpush1.msra.mxu0 %v135
    %260 = vmatprep.subr.mxu0 0.0
    %261 = vmatpush1.msra.mxu0 %v134
    %262 = vmatprep.subr.mxu0 0.0
    %263 = vmatpush1.msra.mxu0 %v133
    %264 = vmatprep.subr.mxu0 0.0
    %265 = vmatpush1.msra.mxu0 %v132
    %266 = vmatprep.subr.mxu0 0.0
    %267 = vmatpush2.msra.mxu0 0.0
    %268 = vmatprep.subr.mxu0 0.0
    %269 = vmatpush2.msra.mxu0 0.0
    %270 = vmatprep.subr.mxu0 0.0
    %271 = vmatpush2.msra.mxu0 0.0
    %272 = vmatprep.subr.mxu0 0.0
    %273 = vmatpush2.msra.mxu0 0.0
    %274 = vmatprep.subr.mxu0 0.0
    %275 = vmatpush2.msra.mxu0 0.0
    %276 = vmatprep.subr.mxu0 0.0
    %277 = vmatpush2.msra.mxu0 0.0
    %278 = vmatprep.subr.mxu0 0.0
    %279 = vmatpush2.msra.mxu0 0.0
    %280 = vmatprep.subr.mxu0 0.0
    %281 = vmatpush2.msra.mxu0 0.0
    %282 = vmatprep.subr.mxu0 0.0
    %283 = vmatpush2.msra.mxu0 0.0
    %284 = vmatprep.subr.mxu0 0.0
    %285 = vmatpush2.msra.mxu0 0.0
    %286 = vmatprep.subr.mxu0 0.0
    %287 = vmatpush2.msra.mxu0 0.0
    %288 = vmatprep.subr.mxu0 0.0
    %289 = vmatpush2.msra.mxu0 0.0
    %290 = vmatprep.subr.mxu0 0.0
    %291 = vmatpush2.msra.mxu0 0.0
    %292 = vmatprep.subr.mxu0 0.0
    %293 = vmatpush2.msra.mxu0 0.0
    %294 = vmatprep.subr.mxu0 0.0
    %295 = vmatpush2.msra.mxu0 0.0
    %296 = vmatprep.subr.mxu0 0.0
    %297 = vmatpush2.msra.mxu0 0.0
    %298 = vmatprep.mubr.f32.mxu0 0.0
    %299 = vmatmul.mubr.f32.gmra.mxu0 %v231
    %v300 = vpop.f32.mrf.mxu0
    %v301 = vadd.f32 0.0, %v300
    %v302 = vpop.f32.mrf.mxu0
    %303 = vdwg.mxu0
    %v304 = vadd.f32 %v233, %v301
    %s305 = sadd.s32 %s148, 1
    %p306 = scmp.lt.s32.totalorder %s305, 1
    %s307 = scalar_select %p306, 1, 0
    %s308 = scvt.s32.f32 %s307
    %v309 = vtanh.pop %v304
    %v310 = vstv %s308
    %v311 = vmul.f32 %v310, %v309
    %s312 = ssub.f32 1.0, %s308
    %v313 = vstv %s312
    %v314 = vmul.f32 %v313, %v231
    %v315 = vadd.f32 %v311, %v314
    %316 = vst [vmem:[#allocation3 + $0x1] sm:$0x1] %v315
    %v317 = vld [vmem:[#allocation2 + $0x2] sm:$0x1]
    %318 = vmatprep.subr.mxu0 0.0
    %319 = vmatpush1.msra.mxu0 %v147
    %320 = vmatprep.subr.mxu0 0.0
    %321 = vmatpush1.msra.mxu0 %v146
    %322 = vmatprep.subr.mxu0 0.0
    %323 = vmatpush1.msra.mxu0 %v145
    %324 = vmatprep.subr.mxu0 0.0
    %325 = vmatpush1.msra.mxu0 %v144
    %326 = vmatprep.subr.mxu0 0.0
    %327 = vmatpush1.msra.mxu0 %v143
    %328 = vmatprep.subr.mxu0 0.0
    %329 = vmatpush1.msra.mxu0 %v142
    %330 = vmatprep.subr.mxu0 0.0
    %331 = vmatpush1.msra.mxu0 %v141
    %332 = vmatprep.subr.mxu0 0.0
    %333 = vmatpush1.msra.mxu0 %v140
    %334 = vmatprep.subr.mxu0 0.0
    %335 = vmatpush1.msra.mxu0 %v139
    %336 = vmatprep.subr.mxu0 0.0
    %337 = vmatpush1.msra.mxu0 %v138
    %338 = vmatprep.subr.mxu0 0.0
    %339 = vmatpush1.msra.mxu0 %v137
    %340 = vmatprep.subr.mxu0 0.0
    %341 = vmatpush1.msra.mxu0 %v136
    %342 = vmatprep.subr.mxu0 0.0
    %343 = vmatpush1.msra.mxu0 %v135
    %344 = vmatprep.subr.mxu0 0.0
    %345 = vmatpush1.msra.mxu0 %v134
    %346 = vmatprep.subr.mxu0 0.0
    %347 = vmatpush1.msra.mxu0 %v133
    %348 = vmatprep.subr.mxu0 0.0
    %349 = vmatpush1.msra.mxu0 %v132
    %350 = vmatprep.subr.mxu0 0.0
    %351 = vmatpush2.msra.mxu0 0.0
    %352 = vmatprep.subr.mxu0 0.0
    %353 = vmatpush2.msra.mxu0 0.0
    %354 = vmatprep.subr.mxu0 0.0
    %355 = vmatpush2.msra.mxu0 0.0
    %356 = vmatprep.subr.mxu0 0.0
    %357 = vmatpush2.msra.mxu0 0.0
    %358 = vmatprep.subr.mxu0 0.0
    %359 = vmatpush2.msra.mxu0 0.0
    %360 = vmatprep.subr.mxu0 0.0
    %361 = vmatpush2.msra.mxu0 0.0
    %362 = vmatprep.subr.mxu0 0.0
    %363 = vmatpush2.msra.mxu0 0.0
    %364 = vmatprep.subr.mxu0 0.0
    %365 = vmatpush2.msra.mxu0 0.0
    %366 = vmatprep.subr.mxu0 0.0
    %367 = vmatpush2.msra.mxu0 0.0
    %368 = vmatprep.subr.mxu0 0.0
    %369 = vmatpush2.msra.mxu0 0.0
    %370 = vmatprep.subr.mxu0 0.0
    %371 = vmatpush2.msra.mxu0 0.0
    %372 = vmatprep.subr.mxu0 0.0
    %373 = vmatpush2.msra.mxu0 0.0
    %374 = vmatprep.subr.mxu0 0.0
    %375 = vmatpush2.msra.mxu0 0.0
    %376 = vmatprep.subr.mxu0 0.0
    %377 = vmatpush2.msra.mxu0 0.0
    %378 = vmatprep.subr.mxu0 0.0
    %379 = vmatpush2.msra.mxu0 0.0
    %380 = vmatprep.subr.mxu0 0.0
    %381 = vmatpush2.msra.mxu0 0.0
    %382 = vmatprep.mubr.f32.mxu0 0.0
    %383 = vmatmul.mubr.f32.gmra.mxu0 %v315
    %v384 = vpop.f32.mrf.mxu0
    %v385 = vadd.f32 0.0, %v384
    %v386 = vpop.f32.mrf.mxu0
    %387 = vdwg.mxu0
    %v388 = vadd.f32 %v317, %v385
    %s389 = sadd.s32 %s148, 2
    %p390 = scmp.lt.s32.totalorder %s389, 1
    %s391 = scalar_select %p390, 1, 0
    %s392 = scvt.s32.f32 %s391
    %v393 = vtanh.pop %v388
    %v394 = vstv %s392
    %v395 = vmul.f32 %v394, %v393
    %s396 = ssub.f32 1.0, %s392
    %v397 = vstv %s396
    %v398 = vmul.f32 %v397, %v315
    %v399 = vadd.f32 %v395, %v398
    %400 = vst [vmem:[#allocation3 + $0x2] sm:$0x1] %v399
    %v401 = vld [vmem:[#allocation2 + $0x3] sm:$0x1]
    %402 = vmatprep.subr.mxu0 0.0
    %403 = vmatpush1.msra.mxu0 %v147
    %404 = vmatprep.subr.mxu0 0.0
    %405 = vmatpush1.msra.mxu0 %v146
    %406 = vmatprep.subr.mxu0 0.0
    %407 = vmatpush1.msra.mxu0 %v145
    %408 = vmatprep.subr.mxu0 0.0
    %409 = vmatpush1.msra.mxu0 %v144
    %410 = vmatprep.subr.mxu0 0.0
    %411 = vmatpush1.msra.mxu0 %v143
    %412 = vmatprep.subr.mxu0 0.0
    %413 = vmatpush1.msra.mxu0 %v142
    %414 = vmatprep.subr.mxu0 0.0
    %415 = vmatpush1.msra.mxu0 %v141
    %416 = vmatprep.subr.mxu0 0.0
    %417 = vmatpush1.msra.mxu0 %v140
    %418 = vmatprep.subr.mxu0 0.0
    %419 = vmatpush1.msra.mxu0 %v139
    %420 = vmatprep.subr.mxu0 0.0
    %421 = vmatpush1.msra.mxu0 %v138
    %422 = vmatprep.subr.mxu0 0.0
    %423 = vmatpush1.msra.mxu0 %v137
    %424 = vmatprep.subr.mxu0 0.0
    %425 = vmatpush1.msra.mxu0 %v136
    %426 = vmatprep.subr.mxu0 0.0
    %427 = vmatpush1.msra.mxu0 %v135
    %428 = vmatprep.subr.mxu0 0.0
    %429 = vmatpush1.msra.mxu0 %v134
    %430 = vmatprep.subr.mxu0 0.0
    %431 = vmatpush1.msra.mxu0 %v133
    %432 = vmatprep.subr.mxu0 0.0
    %433 = vmatpush1.msra.mxu0 %v132
    %434 = vmatprep.subr.mxu0 0.0
    %435 = vmatpush2.msra.mxu0 0.0
    %436 = vmatprep.subr.mxu0 0.0
    %437 = vmatpush2.msra.mxu0 0.0
    %438 = vmatprep.subr.mxu0 0.0
    %439 = vmatpush2.msra.mxu0 0.0
    %440 = vmatprep.subr.mxu0 0.0
    %441 = vmatpush2.msra.mxu0 0.0
    %442 = vmatprep.subr.mxu0 0.0
    %443 = vmatpush2.msra.mxu0 0.0
    %444 = vmatprep.subr.mxu0 0.0
    %445 = vmatpush2.msra.mxu0 0.0
    %446 = vmatprep.subr.mxu0 0.0
    %447 = vmatpush2.msra.mxu0 0.0
    %448 = vmatprep.subr.mxu0 0.0
    %449 = vmatpush2.msra.mxu0 0.0
    %450 = vmatprep.subr.mxu0 0.0
    %451 = vmatpush2.msra.mxu0 0.0
    %452 = vmatprep.subr.mxu0 0.0
    %453 = vmatpush2.msra.mxu0 0.0
    %454 = vmatprep.subr.mxu0 0.0
    %455 = vmatpush2.msra.mxu0 0.0
    %456 = vmatprep.subr.mxu0 0.0
    %457 = vmatpush2.msra.mxu0 0.0
    %458 = vmatprep.subr.mxu0 0.0
    %459 = vmatpush2.msra.mxu0 0.0
    %460 = vmatprep.subr.mxu0 0.0
    %461 = vmatpush2.msra.mxu0 0.0
    %462 = vmatprep.subr.mxu0 0.0
    %463 = vmatpush2.msra.mxu0 0.0
    %464 = vmatprep.subr.mxu0 0.0
    %465 = vmatpush2.msra.mxu0 0.0
    %466 = vmatprep.mubr.f32.mxu0 0.0
    %467 = vmatmul.mubr.f32.gmra.mxu0 %v399
    %v468 = vpop.f32.mrf.mxu0
    %v469 = vadd.f32 0.0, %v468
    %v470 = vpop.f32.mrf.mxu0
    %471 = vdwg.mxu0
    %v472 = vadd.f32 %v401, %v469
    %s473 = sadd.s32 %s148, 3
    %p474 = scmp.lt.s32.totalorder %s473, 1
    %s475 = scalar_select %p474, 1, 0
    %s476 = scvt.s32.f32 %s475
    %v477 = vtanh.pop %v472
    %v478 = vstv %s476
    %v479 = vmul.f32 %v478, %v477
    %s480 = ssub.f32 1.0, %s476
    %v481 = vstv %s480
    %v482 = vmul.f32 %v481, %v399
    %v483 = vadd.f32 %v479, %v482
    %484 = vst [vmem:[#allocation3 + $0x3] sm:$0x1] %v483
    %v485 = vld [vmem:[#allocation2 + $0x4] sm:$0x1]
    %486 = vmatprep.subr.mxu0 0.0
    %487 = vmatpush1.msra.mxu0 %v147
    %488 = vmatprep.subr.mxu0 0.0
    %489 = vmatpush1.msra.mxu0 %v146
    %490 = vmatprep.subr.mxu0 0.0
    %491 = vmatpush1.msra.mxu0 %v145
    %492 = vmatprep.subr.mxu0 0.0
    %493 = vmatpush1.msra.mxu0 %v144
    %494 = vmatprep.subr.mxu0 0.0
    %495 = vmatpush1.msra.mxu0 %v143
    %496 = vmatprep.subr.mxu0 0.0
    %497 = vmatpush1.msra.mxu0 %v142
    %498 = vmatprep.subr.mxu0 0.0
    %499 = vmatpush1.msra.mxu0 %v141
    %500 = vmatprep.subr.mxu0 0.0
    %501 = vmatpush1.msra.mxu0 %v140
    %502 = vmatprep.subr.mxu0 0.0
    %503 = vmatpush1.msra.mxu0 %v139
    %504 = vmatprep.subr.mxu0 0.0
    %505 = vmatpush1.msra.mxu0 %v138
    %506 = vmatprep.subr.mxu0 0.0
    %507 = vmatpush1.msra.mxu0 %v137
    %508 = vmatprep.subr.mxu0 0.0
    %509 = vmatpush1.msra.mxu0 %v136
    %510 = vmatprep.subr.mxu0 0.0
    %511 = vmatpush1.msra.mxu0 %v135
    %512 = vmatprep.subr.mxu0 0.0
    %513 = vmatpush1.msra.mxu0 %v134
    %514 = vmatprep.subr.mxu0 0.0
    %515 = vmatpush1.msra.mxu0 %v133
    %516 = vmatprep.subr.mxu0 0.0
    %517 = vmatpush1.msra.mxu0 %v132
    %518 = vmatprep.subr.mxu0 0.0
    %519 = vmatpush2.msra.mxu0 0.0
    %520 = vmatprep.subr.mxu0 0.0
    %521 = vmatpush2.msra.mxu0 0.0
    %522 = vmatprep.subr.mxu0 0.0
    %523 = vmatpush2.msra.mxu0 0.0
    %524 = vmatprep.subr.mxu0 0.0
    %525 = vmatpush2.msra.mxu0 0.0
    %526 = vmatprep.subr.mxu0 0.0
    %527 = vmatpush2.msra.mxu0 0.0
    %528 = vmatprep.subr.mxu0 0.0
    %529 = vmatpush2.msra.mxu0 0.0
    %530 = vmatprep.subr.mxu0 0.0
    %531 = vmatpush2.msra.mxu0 0.0
    %532 = vmatprep.subr.mxu0 0.0
    %533 = vmatpush2.msra.mxu0 0.0
    %534 = vmatprep.subr.mxu0 0.0
    %535 = vmatpush2.msra.mxu0 0.0
    %536 = vmatprep.subr.mxu0 0.0
    %537 = vmatpush2.msra.mxu0 0.0
    %538 = vmatprep.subr.mxu0 0.0
    %539 = vmatpush2.msra.mxu0 0.0
    %540 = vmatprep.subr.mxu0 0.0
    %541 = vmatpush2.msra.mxu0 0.0
    %542 = vmatprep.subr.mxu0 0.0
    %543 = vmatpush2.msra.mxu0 0.0
    %544 = vmatprep.subr.mxu0 0.0
    %545 = vmatpush2.msra.mxu0 0.0
    %546 = vmatprep.subr.mxu0 0.0
    %547 = vmatpush2.msra.mxu0 0.0
    %548 = vmatprep.subr.mxu0 0.0
    %549 = vmatpush2.msra.mxu0 0.0
    %550 = vmatprep.mubr.f32.mxu0 0.0
    %551 = vmatmul.mubr.f32.gmra.mxu0 %v483
    %v552 = vpop.f32.mrf.mxu0
    %v553 = vadd.f32 0.0, %v552
    %v554 = vpop.f32.mrf.mxu0
    %555 = vdwg.mxu0
    %v556 = vadd.f32 %v485, %v553
    %s557 = sadd.s32 %s148, 4
    %p558 = scmp.lt.s32.totalorder %s557, 1
    %s559 = scalar_select %p558, 1, 0
    %s560 = scvt.s32.f32 %s559
    %v561 = vtanh.pop %v556
    %v562 = vstv %s560
    %v563 = vmul.f32 %v562, %v561
    %s564 = ssub.f32 1.0, %s560
    %v565 = vstv %s564
    %v566 = vmul.f32 %v565, %v483
    %v567 = vadd.f32 %v563, %v566
    %568 = vst [vmem:[#allocation3 + $0x4] sm:$0x1] %v567
    %v569 = vld [vmem:[#allocation2 + $0x5] sm:$0x1]
    %570 = vmatprep.subr.mxu0 0.0
    %571 = vmatpush1.msra.mxu0 %v147
    %572 = vmatprep.subr.mxu0 0.0
    %573 = vmatpush1.msra.mxu0 %v146
    %574 = vmatprep.subr.mxu0 0.0
    %575 = vmatpush1.msra.mxu0 %v145
    %576 = vmatprep.subr.mxu0 0.0
    %577 = vmatpush1.msra.mxu0 %v144
    %578 = vmatprep.subr.mxu0 0.0
    %579 = vmatpush1.msra.mxu0 %v143
    %580 = vmatprep.subr.mxu0 0.0
    %581 = vmatpush1.msra.mxu0 %v142
    %582 = vmatprep.subr.mxu0 0.0
    %583 = vmatpush1.msra.mxu0 %v141
    %584 = vmatprep.subr.mxu0 0.0
    %585 = vmatpush1.msra.mxu0 %v140
    %586 = vmatprep.subr.mxu0 0.0
    %587 = vmatpush1.msra.mxu0 %v139
    %588 = vmatprep.subr.mxu0 0.0
    %589 = vmatpush1.msra.mxu0 %v138
    %590 = vmatprep.subr.mxu0 0.0
    %591 = vmatpush1.msra.mxu0 %v137
    %592 = vmatprep.subr.mxu0 0.0
    %593 = vmatpush1.msra.mxu0 %v136
    %594 = vmatprep.subr.mxu0 0.0
    %595 = vmatpush1.msra.mxu0 %v135
    %596 = vmatprep.subr.mxu0 0.0
    %597 = vmatpush1.msra.mxu0 %v134
    %598 = vmatprep.subr.mxu0 0.0
    %599 = vmatpush1.msra.mxu0 %v133
    %600 = vmatprep.subr.mxu0 0.0
    %601 = vmatpush1.msra.mxu0 %v132
    %602 = vmatprep.subr.mxu0 0.0
    %603 = vmatpush2.msra.mxu0 0.0
    %604 = vmatprep.subr.mxu0 0.0
    %605 = vmatpush2.msra.mxu0 0.0
    %606 = vmatprep.subr.mxu0 0.0
    %607 = vmatpush2.msra.mxu0 0.0
    %608 = vmatprep.subr.mxu0 0.0
    %609 = vmatpush2.msra.mxu0 0.0
    %610 = vmatprep.subr.mxu0 0.0
    %611 = vmatpush2.msra.mxu0 0.0
    %612 = vmatprep.subr.mxu0 0.0
    %613 = vmatpush2.msra.mxu0 0.0
    %614 = vmatprep.subr.mxu0 0.0
    %615 = vmatpush2.msra.mxu0 0.0
    %616 = vmatprep.subr.mxu0 0.0
    %617 = vmatpush2.msra.mxu0 0.0
    %618 = vmatprep.subr.mxu0 0.0
    %619 = vmatpush2.msra.mxu0 0.0
    %620 = vmatprep.subr.mxu0 0.0
    %621 = vmatpush2.msra.mxu0 0.0
    %622 = vmatprep.subr.mxu0 0.0
    %623 = vmatpush2.msra.mxu0 0.0
    %624 = vmatprep.subr.mxu0 0.0
    %625 = vmatpush2.msra.mxu0 0.0
    %626 = vmatprep.subr.mxu0 0.0
    %627 = vmatpush2.msra.mxu0 0.0
    %628 = vmatprep.subr.mxu0 0.0
    %629 = vmatpush2.msra.mxu0 0.0
    %630 = vmatprep.subr.mxu0 0.0
    %631 = vmatpush2.msra.mxu0 0.0
    %632 = vmatprep.subr.mxu0 0.0
    %633 = vmatpush2.msra.mxu0 0.0
    %634 = vmatprep.mubr.f32.mxu0 0.0
    %635 = vmatmul.mubr.f32.gmra.mxu0 %v567
    %v636 = vpop.f32.mrf.mxu0
    %v637 = vadd.f32 0.0, %v636
    %v638 = vpop.f32.mrf.mxu0
    %639 = vdwg.mxu0
    %v640 = vadd.f32 %v569, %v637
    %s641 = sadd.s32 %s148, 5
    %p642 = scmp.lt.s32.totalorder %s641, 1
    %s643 = scalar_select %p642, 1, 0
    %s644 = scvt.s32.f32 %s643
    %v645 = vtanh.pop %v640
    %v646 = vstv %s644
    %v647 = vmul.f32 %v646, %v645
    %s648 = ssub.f32 1.0, %s644
    %v649 = vstv %s648
    %v650 = vmul.f32 %v649, %v567
    %v651 = vadd.f32 %v647, %v650
    %652 = vst [vmem:[#allocation3 + $0x5] sm:$0x1] %v651
    %v653 = vld [vmem:[#allocation2 + $0x6] sm:$0x1]
    %654 = vmatprep.subr.mxu0 0.0
    %655 = vmatpush1.msra.mxu0 %v147
    %656 = vmatprep.subr.mxu0 0.0
    %657 = vmatpush1.msra.mxu0 %v146
    %658 = vmatprep.subr.mxu0 0.0
    %659 = vmatpush1.msra.mxu0 %v145
    %660 = vmatprep.subr.mxu0 0.0
    %661 = vmatpush1.msra.mxu0 %v144
    %662 = vmatprep.subr.mxu0 0.0
    %663 = vmatpush1.msra.mxu0 %v143
    %664 = vmatprep.subr.mxu0 0.0
    %665 = vmatpush1.msra.mxu0 %v142
    %666 = vmatprep.subr.mxu0 0.0
    %667 = vmatpush1.msra.mxu0 %v141
    %668 = vmatprep.subr.mxu0 0.0
    %669 = vmatpush1.msra.mxu0 %v140
    %670 = vmatprep.subr.mxu0 0.0
    %671 = vmatpush1.msra.mxu0 %v139
    %672 = vmatprep.subr.mxu0 0.0
    %673 = vmatpush1.msra.mxu0 %v138
    %674 = vmatprep.subr.mxu0 0.0
    %675 = vmatpush1.msra.mxu0 %v137
    %676 = vmatprep.subr.mxu0 0.0
    %677 = vmatpush1.msra.mxu0 %v136
    %678 = vmatprep.subr.mxu0 0.0
    %679 = vmatpush1.msra.mxu0 %v135
    %680 = vmatprep.subr.mxu0 0.0
    %681 = vmatpush1.msra.mxu0 %v134
    %682 = vmatprep.subr.mxu0 0.0
    %683 = vmatpush1.msra.mxu0 %v133
    %684 = vmatprep.subr.mxu0 0.0
    %685 = vmatpush1.msra.mxu0 %v132
    %686 = vmatprep.subr.mxu0 0.0
    %687 = vmatpush2.msra.mxu0 0.0
    %688 = vmatprep.subr.mxu0 0.0
    %689 = vmatpush2.msra.mxu0 0.0
    %690 = vmatprep.subr.mxu0 0.0
    %691 = vmatpush2.msra.mxu0 0.0
    %692 = vmatprep.subr.mxu0 0.0
    %693 = vmatpush2.msra.mxu0 0.0
    %694 = vmatprep.subr.mxu0 0.0
    %695 = vmatpush2.msra.mxu0 0.0
    %696 = vmatprep.subr.mxu0 0.0
    %697 = vmatpush2.msra.mxu0 0.0
    %698 = vmatprep.subr.mxu0 0.0
    %699 = vmatpush2.msra.mxu0 0.0
    %700 = vmatprep.subr.mxu0 0.0
    %701 = vmatpush2.msra.mxu0 0.0
    %702 = vmatprep.subr.mxu0 0.0
    %703 = vmatpush2.msra.mxu0 0.0
    %704 = vmatprep.subr.mxu0 0.0
    %705 = vmatpush2.msra.mxu0 0.0
    %706 = vmatprep.subr.mxu0 0.0
    %707 = vmatpush2.msra.mxu0 0.0
    %708 = vmatprep.subr.mxu0 0.0
    %709 = vmatpush2.msra.mxu0 0.0
    %710 = vmatprep.subr.mxu0 0.0
    %711 = vmatpush2.msra.mxu0 0.0
    %712 = vmatprep.subr.mxu0 0.0
    %713 = vmatpush2.msra.mxu0 0.0
    %714 = vmatprep.subr.mxu0 0.0
    %715 = vmatpush2.msra.mxu0 0.0
    %716 = vmatprep.subr.mxu0 0.0
    %717 = vmatpush2.msra.mxu0 0.0
    %718 = vmatprep.mubr.f32.mxu0 0.0
    %719 = vmatmul.mubr.f32.gmra.mxu0 %v651
    %v720 = vpop.f32.mrf.mxu0
    %v721 = vadd.f32 0.0, %v720
    %v722 = vpop.f32.mrf.mxu0
    %723 = vdwg.mxu0
    %v724 = vadd.f32 %v653, %v721
    %s725 = sadd.s32 %s148, 6
    %p726 = scmp.lt.s32.totalorder %s725, 1
    %s727 = scalar_select %p726, 1, 0
    %s728 = scvt.s32.f32 %s727
    %v729 = vtanh.pop %v724
    %v730 = vstv %s728
    %v731 = vmul.f32 %v730, %v729
    %s732 = ssub.f32 1.0, %s728
    %v733 = vstv %s732
    %v734 = vmul.f32 %v733, %v651
    %v735 = vadd.f32 %v731, %v734
    %736 = vst [vmem:[#allocation3 + $0x6] sm:$0x1] %v735
    %v737 = vld [vmem:[#allocation2 + $0x7] sm:$0x1]
    %738 = vmatprep.subr.mxu0 0.0
    %739 = vmatpush1.msra.mxu0 %v147
    %740 = vmatprep.subr.mxu0 0.0
    %741 = vmatpush1.msra.mxu0 %v146
    %742 = vmatprep.subr.mxu0 0.0
    %743 = vmatpush1.msra.mxu0 %v145
    %744 = vmatprep.subr.mxu0 0.0
    %745 = vmatpush1.msra.mxu0 %v144
    %746 = vmatprep.subr.mxu0 0.0
    %747 = vmatpush1.msra.mxu0 %v143
    %748 = vmatprep.subr.mxu0 0.0
    %749 = vmatpush1.msra.mxu0 %v142
    %750 = vmatprep.subr.mxu0 0.0
    %751 = vmatpush1.msra.mxu0 %v141
    %752 = vmatprep.subr.mxu0 0.0
    %753 = vmatpush1.msra.mxu0 %v140
    %754 = vmatprep.subr.mxu0 0.0
    %755 = vmatpush1.msra.mxu0 %v139
    %756 = vmatprep.subr.mxu0 0.0
    %757 = vmatpush1.msra.mxu0 %v138
    %758 = vmatprep.subr.mxu0 0.0
    %759 = vmatpush1.msra.mxu0 %v137
    %760 = vmatprep.subr.mxu0 0.0
    %761 = vmatpush1.msra.mxu0 %v136
    %762 = vmatprep.subr.mxu0 0.0
    %763 = vmatpush1.msra.mxu0 %v135
    %764 = vmatprep.subr.mxu0 0.0
    %765 = vmatpush1.msra.mxu0 %v134
    %766 = vmatprep.subr.mxu0 0.0
    %767 = vmatpush1.msra.mxu0 %v133
    %768 = vmatprep.subr.mxu0 0.0
    %769 = vmatpush1.msra.mxu0 %v132
    %770 = vmatprep.subr.mxu0 0.0
    %771 = vmatpush2.msra.mxu0 0.0
    %772 = vmatprep.subr.mxu0 0.0
    %773 = vmatpush2.msra.mxu0 0.0
    %774 = vmatprep.subr.mxu0 0.0
    %775 = vmatpush2.msra.mxu0 0.0
    %776 = vmatprep.subr.mxu0 0.0
    %777 = vmatpush2.msra.mxu0 0.0
    %778 = vmatprep.subr.mxu0 0.0
    %779 = vmatpush2.msra.mxu0 0.0
    %780 = vmatprep.subr.mxu0 0.0
    %781 = vmatpush2.msra.mxu0 0.0
    %782 = vmatprep.subr.mxu0 0.0
    %783 = vmatpush2.msra.mxu0 0.0
    %784 = vmatprep.subr.mxu0 0.0
    %785 = vmatpush2.msra.mxu0 0.0
    %786 = vmatprep.subr.mxu0 0.0
    %787 = vmatpush2.msra.mxu0 0.0
    %788 = vmatprep.subr.mxu0 0.0
    %789 = vmatpush2.msra.mxu0 0.0
    %790 = vmatprep.subr.mxu0 0.0
    %791 = vmatpush2.msra.mxu0 0.0
    %792 = vmatprep.subr.mxu0 0.0
    %793 = vmatpush2.msra.mxu0 0.0
    %794 = vmatprep.subr.mxu0 0.0
    %795 = vmatpush2.msra.mxu0 0.0
    %796 = vmatprep.subr.mxu0 0.0
    %797 = vmatpush2.msra.mxu0 0.0
    %798 = vmatprep.subr.mxu0 0.0
    %799 = vmatpush2.msra.mxu0 0.0
    %800 = vmatprep.subr.mxu0 0.0
    %801 = vmatpush2.msra.mxu0 0.0
    %802 = vmatprep.mubr.f32.mxu0 0.0
    %803 = vmatmul.mubr.f32.gmra.mxu0 %v735
    %v804 = vpop.f32.mrf.mxu0
    %v805 = vadd.f32 0.0, %v804
    %v806 = vpop.f32.mrf.mxu0
    %807 = vdwg.mxu0
    %v808 = vadd.f32 %v737, %v805
    %s809 = sadd.s32 %s148, 7
    %p810 = scmp.lt.s32.totalorder %s809, 1
    %s811 = scalar_select %p810, 1, 0
    %s812 = scvt.s32.f32 %s811
    %v813 = vtanh.pop %v808
    %v814 = vstv %s812
    %v815 = vmul.f32 %v814, %v813
    %s816 = ssub.f32 1.0, %s812
    %v817 = vstv %s816
    %v818 = vmul.f32 %v817, %v735
    %v819 = vadd.f32 %v815, %v818
    %820 = vst [vmem:[#allocation3 + $0x7] sm:$0x1] %v819
    %v821 = vlaneseq
    %v822 = vshrl.u32 %v821, 7
    %v823 = vsub.s32 0, %v822
    %v824 = vrot.slane %v819, %v823
    %825 = vst [vmem:[%s4] sm:$0xff] %v824
    %v826 = vld [vmem:[#allocation3] sm:$0xff]
    %v827 = vld [vmem:[#allocation4 + $0x100] sm:$0xff]
    %v828 = vld [vmem:[#allocation4 + $0x108] sm:$0xff]
    %v829 = vld [vmem:[#allocation4 + $0x110] sm:$0xff]
    %v830 = vld [vmem:[#allocation4 + $0x118] sm:$0xff]
    %v831 = vld [vmem:[#allocation4 + $0x120] sm:$0xff]
    %v832 = vld [vmem:[#allocation4 + $0x128] sm:$0xff]
    %v833 = vld [vmem:[#allocation4 + $0x130] sm:$0xff]
    %v834 = vld [vmem:[#allocation4 + $0x138] sm:$0xff]
    %v835 = vld [vmem:[#allocation4 + $0x140] sm:$0xff]
    %v836 = vld [vmem:[#allocation4 + $0x148] sm:$0xff]
    %v837 = vld [vmem:[#allocation4 + $0x150] sm:$0xff]
    %v838 = vld [vmem:[#allocation4 + $0x158] sm:$0xff]
    %v839 = vld [vmem:[#allocation4 + $0x160] sm:$0xff]
    %v840 = vld [vmem:[#allocation4 + $0x168] sm:$0xff]
    %v841 = vld [vmem:[#allocation4 + $0x170] sm:$0xff]
    %v842 = vld [vmem:[#allocation4 + $0x178] sm:$0xff]
    %v843 = vld [vmem:[%s3 + $0x1] sm:$0x1]
    %v844 = vlaneseq
    %v845 = vshrl.u32 %v844, 7
    %v846 = vsub.s32 0, %v845
    %v847 = vrot.slane %v843, %v846
    %848 = vmatprep.subr.mxu0 0.0
    %849 = vmatpush1.msra.mxu0 %v842
    %850 = vmatprep.subr.mxu0 0.0
    %851 = vmatpush1.msra.mxu0 %v841
    %852 = vmatprep.subr.mxu0 0.0
    %853 = vmatpush1.msra.mxu0 %v840
    %854 = vmatprep.subr.mxu0 0.0
    %855 = vmatpush1.msra.mxu0 %v839
    %856 = vmatprep.subr.mxu0 0.0
    %857 = vmatpush1.msra.mxu0 %v838
    %858 = vmatprep.subr.mxu0 0.0
    %859 = vmatpush1.msra.mxu0 %v837
    %860 = vmatprep.subr.mxu0 0.0
    %861 = vmatpush1.msra.mxu0 %v836
    %862 = vmatprep.subr.mxu0 0.0
    %863 = vmatpush1.msra.mxu0 %v835
    %864 = vmatprep.subr.mxu0 0.0
    %865 = vmatpush1.msra.mxu0 %v834
    %866 = vmatprep.subr.mxu0 0.0
    %867 = vmatpush1.msra.mxu0 %v833
    %868 = vmatprep.subr.mxu0 0.0
    %869 = vmatpush1.msra.mxu0 %v832
    %870 = vmatprep.subr.mxu0 0.0
    %871 = vmatpush1.msra.mxu0 %v831
    %872 = vmatprep.subr.mxu0 0.0
    %873 = vmatpush1.msra.mxu0 %v830
    %874 = vmatprep.subr.mxu0 0.0
    %875 = vmatpush1.msra.mxu0 %v829
    %876 = vmatprep.subr.mxu0 0.0
    %877 = vmatpush1.msra.mxu0 %v828
    %878 = vmatprep.subr.mxu0 0.0
    %879 = vmatpush1.msra.mxu0 %v827
    %880 = vmatprep.subr.mxu0 0.0
    %881 = vmatpush2.msra.mxu0 0.0
    %882 = vmatprep.subr.mxu0 0.0
    %883 = vmatpush2.msra.mxu0 0.0
    %884 = vmatprep.subr.mxu0 0.0
    %885 = vmatpush2.msra.mxu0 0.0
    %886 = vmatprep.subr.mxu0 0.0
    %887 = vmatpush2.msra.mxu0 0.0
    %888 = vmatprep.subr.mxu0 0.0
    %889 = vmatpush2.msra.mxu0 0.0
    %890 = vmatprep.subr.mxu0 0.0
    %891 = vmatpush2.msra.mxu0 0.0
    %892 = vmatprep.subr.mxu0 0.0
    %893 = vmatpush2.msra.mxu0 0.0
    %894 = vmatprep.subr.mxu0 0.0
    %895 = vmatpush2.msra.mxu0 0.0
    %896 = vmatprep.subr.mxu0 0.0
    %897 = vmatpush2.msra.mxu0 0.0
    %898 = vmatprep.subr.mxu0 0.0
    %899 = vmatpush2.msra.mxu0 0.0
    %900 = vmatprep.subr.mxu0 0.0
    %901 = vmatpush2.msra.mxu0 0.0
    %902 = vmatprep.subr.mxu0 0.0
    %903 = vmatpush2.msra.mxu0 0.0
    %904 = vmatprep.subr.mxu0 0.0
    %905 = vmatpush2.msra.mxu0 0.0
    %906 = vmatprep.subr.mxu0 0.0
    %907 = vmatpush2.msra.mxu0 0.0
    %908 = vmatprep.subr.mxu0 0.0
    %909 = vmatpush2.msra.mxu0 0.0
    %910 = vmatprep.subr.mxu0 0.0
    %911 = vmatpush2.msra.mxu0 0.0
    %912 = vmatprep.mubr.f32.mxu0 0.0
    %913 = vmatmul.mubr.f32.gmra.mxu0 %v826
    %v914 = vpop.f32.mrf.mxu0
    %v915 = vadd.f32 %v847, %v914
    %v916 = vpop.f32.mrf.mxu0
    %917 = vdwg.mxu0
    %918 = vst [vmem:[%s5] sm:$0xff] %v915
    // Predicated region
    $region26: #{forward.1} parent=1 // pred_check
      _
    $region27: #{forward.1} parent=1 // pred_check_branch
      %920 = sbr.rel (0) target = $region29
    $region28: #{forward.1} parent=1 // pred_region
      _
    $region29: #{forward.1} parent=1 // pred_fallthru
      _
    // Predicated region
    $region30: #{forward.1} parent=1 // pred_check
      _
    $region31: #{forward.1} parent=1 // pred_check_branch
      %922 = sbr.rel (0) target = $region33
    $region32: #{forward.1} parent=1 // pred_region
      _
    $region33: #{forward.1} parent=1 // pred_fallthru
      _
    // Predicated region
    $region34: #{forward.1} parent=1 // pred_check
      _
    $region35: #{forward.1} parent=1 // pred_check_branch
      %924 = sbr.rel (0) target = $region37
    $region36: #{forward.1} parent=1 // pred_region
      _
    $region37: #{forward.1} parent=1 // pred_fallthru
      _
    // Predicated region
    $region38: #{forward.1} parent=1 // pred_check
      _
    $region39: #{forward.1} parent=1 // pred_check_branch
      %926 = sbr.rel (0) target = $region41
    $region40: #{forward.1} parent=1 // pred_region
      _
    $region41: #{forward.1} parent=1 // pred_fallthru
      _
    %927 = vsyncpa [#allocation5], 1

</llo_original>
